<compile_context>
chip_gen: v7x
topology: tpu7x:2x2x1
jax: 0.10.0
libtpu: 0.0.40
codegen_flags: <defaults>
</compile_context>

<pallas_src>
import math

import jax
import jax.numpy as jnp
from jax.experimental import pallas as pl
from jax.experimental.pallas import tpu as pltpu


def _gate_kernel(logit_threshold):
    def kernel(x_ref, w_ref, o_ref):
        # x_ref: [TB, H], w_ref: [E, H] (PyTorch Linear layout).
        # Contract on H, producing a transposed [E, TB] tile so the output's
        # last (lane) dim is TB — lane-dense stores + contiguous writeback.
        logits = jax.lax.dot_general(
            w_ref[...],
            x_ref[...],
            dimension_numbers=(((1,), (1,)), ((), ())),
            preferred_element_type=jnp.float32,
        )
        # sigmoid(logits) > thr  <=>  logits > logit(thr)
        o_ref[...] = (logits > logit_threshold).astype(o_ref.dtype)

    return kernel


def _vmem_bytes(tb, H, E):
    """Rough per-step VMEM working set: 2x buffered f32 x tile, 2x weight,
    2x sublane-padded int8 [E, TB] out block."""
    x_bytes = 2 * tb * H * 4
    w_bytes = 2 * E * H * 4
    e_pad = max(8, ((E + 7) // 8) * 8)
    o_bytes = 2 * e_pad * tb
    return x_bytes + w_bytes + o_bytes


def _pick_batch_tile(B, H, E, *, x_tile_bytes=2 << 20, vmem_cap_bytes=24 << 20):
    """Byte-targeted TB: ~x_tile_bytes of x per step, multiple of 128 (the
    transposed out block needs a 128-divisible lane dim), capped so the grid
    keeps >= ~8 steps (>= 4 per TC on v7x) and the working set fits VMEM."""
    if B <= 128:
        return B  # full-array block; all dims equal full extents -> legal
    rows = max(128, (x_tile_bytes // (4 * H)) // 128 * 128)
    if rows >= B:
        return B
    tb = rows
    # Keep at least ~8 grid steps so the "parallel" axis feeds both v7x TCs
    # and BlockSpec has something to double-buffer against.
    if B >= 8 * 128:
        tb = min(tb, max(128, (B // 8) // 128 * 128))
    # Shrink to the VMEM budget (never below one 128-row tile).
    while tb > 128 and _vmem_bytes(tb, H, E) > vmem_cap_bytes:
        tb = max(128, (tb // 2) // 128 * 128)
    return tb


def gate_forward(x, weight, threshold=0.5):
    """x: [B, H] float32; weight: [E, H] float32 (PyTorch nn.Linear layout).

    Returns int32 [B, E] of 0/1, matching
    torch.where(sigmoid(x @ W.T) > threshold, 1, 0).
    """
    B, H = x.shape
    E, H2 = weight.shape
    assert H == H2

    # Threshold in logit space (exact 0.0 for threshold=0.5); guard endpoints.
    # NOTE: threshold is baked in via closure; a new value retraces.
    if threshold <= 0.0:
        logit_threshold = -float("inf")  # sigmoid(z) > 0  -> always 1
    elif threshold >= 1.0:
        logit_threshold = float("inf")   # sigmoid(z) > 1  -> always 0
    else:
        logit_threshold = float(math.log(threshold / (1.0 - threshold)))

    TB = _pick_batch_tile(B, H, E)
    grid = (pl.cdiv(B, TB),)

    # Explicit scoped-VMEM limit: 32 MiB is safe on all generations (<= v7x's
    # 64 MiB physical); raise further only if the working set demands it.
    vmem_limit = int(min(max(32 << 20, _vmem_bytes(TB, H, E) + (8 << 20)), 48 << 20))

    out_t = pl.pallas_call(
        _gate_kernel(logit_threshold),
        out_shape=jax.ShapeDtypeStruct((E, B), jnp.int8),
        grid=grid,
        in_specs=[
            # x tiled over batch; H (lane axis) kept whole.
            pl.BlockSpec((TB, H), lambda i: (i, 0)),
            # weight is small: full-array block, resident across batch tiles.
            # TODO(synk): single-buffer this (pipeline_mode=pl.Buffered(1)) once
            # verified on the target jax version; negligible for small E.
            pl.BlockSpec((E, H), lambda i: (0, 0)),
        ],
        # Transposed, lane-dense output block [E, TB].
        out_specs=pl.BlockSpec((E, TB), lambda i: (0, i)),
        compiler_params=pltpu.CompilerParams(
            dimension_semantics=("parallel",),
            vmem_limit_bytes=vmem_limit,
        ),
        cost_estimate=pl.CostEstimate(
            flops=2 * B * E * H,
            transcendentals=0,
            bytes_accessed=4 * (B * H + E * H) + B * E,
        ),
    )(x, weight)

    # Tiny [E, B] -> [B, E] transpose + widen to int32 to match
    # torch.where(..., 1, 0) semantics (integer 0/1 mask).
    return out_t.T.astype(jnp.int32)


if __name__ == "__main__":
    # Config consistent with the module: hidden=32, experts=4, batch=8.
    hidden_size = 32
    num_experts = 4
    batch = 8
    threshold = 0.5

    key = jax.random.PRNGKey(0)
    kx, kw = jax.random.split(key)

    # nn.Linear(hidden, experts, bias=False) => weight shape [E, H].
    x = jax.random.normal(kx, (batch, hidden_size), dtype=jnp.float32)
    weight = jax.random.normal(kw, (num_experts, hidden_size), dtype=jnp.float32) * (
        1.0 / jnp.sqrt(hidden_size)
    )

    out = gate_forward(x, weight, threshold)
    out = jax.block_until_ready(out)

    # Reference check in plain JAX (original sigmoid-path semantics).
    ref = jnp.where(jax.nn.sigmoid(x @ weight.T) > threshold, 1, 0).astype(jnp.int32)
    assert out.shape == (batch, num_experts)
    assert out.dtype == jnp.int32
    assert bool(jnp.all(out == ref))

    print("KERNEL_OK")
</pallas_src>

<mosaic_0001>
module attributes {stable_mosaic.version = 11 : i64} {
  func.func @kernel(%arg0: i32, %arg1: memref<8x32xf32, #tpu.memory_space<vmem>>, %arg2: memref<4x32xf32, #tpu.memory_space<vmem>>, %arg3: memref<4x8xi8, #tpu.memory_space<vmem>>) attributes {dimension_semantics = [#tpu.dimension_semantics<parallel>], iteration_bounds = array<i64: 1>, scalar_prefetch = 0 : i64, scratch_operands = 0 : i64, tpu.core_type = #tpu.core_type<tc>, window_params = [{transform_indices = @transform_0, window_bounds = array<i64: 8, 32>}, {pipeline_mode = #tpu.pipeline_mode<synchronous>, transform_indices = @transform_1, window_bounds = array<i64: 4, 32>}, {transform_indices = @transform_2, window_bounds = array<i64: 4, 8>}]} {
    %c0 = arith.constant 0 : index
    %c0_0 = arith.constant 0 : index
    %0 = vector.load %arg2[%c0, %c0_0] : memref<4x32xf32, #tpu.memory_space<vmem>>, vector<4x32xf32>
    %c0_1 = arith.constant 0 : index
    %c0_2 = arith.constant 0 : index
    %1 = vector.load %arg1[%c0_1, %c0_2] : memref<8x32xf32, #tpu.memory_space<vmem>>, vector<8x32xf32>
    %cst = arith.constant dense<0.000000e+00> : vector<4x8xf32>
    %2 = tpu.matmul %0, %1, %cst {dimension_numbers = #tpu.dot_dimension_numbers<[1], [1], [0], [0], [0, 0, 1, 0], [], []>} : vector<4x32xf32>, vector<8x32xf32>, vector<4x8xf32> -> vector<4x8xf32>
    %cst_3 = arith.constant 0.000000e+00 : f32
    %3 = vector.broadcast %cst_3 : f32 to vector<4x8xf32>
    %4 = arith.cmpf ogt, %2, %3 : vector<4x8xf32>
    %5 = arith.extui %4 : vector<4x8xi1> to vector<4x8xi8>
    %c0_4 = arith.constant 0 : index
    %c0_5 = arith.constant 0 : index
    %6 = vector.load %arg3[%c0_4, %c0_5] : memref<4x8xi8, #tpu.memory_space<vmem>>, vector<4x8xi8>
    tpu.vector_store %arg3[%c0_4, %c0_5], %5 {strides = array<i32>} : memref<4x8xi8, #tpu.memory_space<vmem>>, vector<4x8xi8>,
    return
  }
  func.func @transform_0(%arg0: i32) -> (i32, i32) {
    %c0_i32 = arith.constant 0 : i32
    %c0_i32_0 = arith.constant 0 : i32
    return %arg0, %c0_i32 : i32, i32
  }
  func.func @transform_1(%arg0: i32) -> (i32, i32) {
    %c0_i32 = arith.constant 0 : i32
    %c0_i32_0 = arith.constant 0 : i32
    %c0_i32_1 = arith.constant 0 : i32
    return %c0_i32, %c0_i32_0 : i32, i32
  }
  func.func @transform_2(%arg0: i32) -> (i32, i32) {
    %c0_i32 = arith.constant 0 : i32
    %c0_i32_0 = arith.constant 0 : i32
    return %c0_i32, %arg0 : i32, i32
  }
}

</mosaic_0001>

<llo_original>
// kernel: tpu_custom_call.1
$region0: #{tpu_custom_call.1}
  #allocation0 [shape = 'u32[]', space=smem, size = 0x4, offset = 0x4, fixed_abs, tag = 'smem constant byte address 0x4 - core index']
  #allocation1 [shape = 'u32[144,128]{1,0:T(1,128)}', space=vmem, size = 0x12000, scoped, tag = 'internal scratch']
  %s0 = inlined_call_operand.hbm [shape: f32[8,32], index: 0, kind: input, shape index: {}]
  %s1 = inlined_call_operand.hbm [shape: f32[4,32], index: 1, kind: input, shape index: {}]
  %s2 = inlined_call_operand.hbm [shape: s8[4,8], index: 2, kind: output, shape index: {}]
  %s3 = sld [smem:[#allocation0]]
  $region26: #{tpu_custom_call.1} parent=0
    _
  %s5 = ssub.s32 1, %s3
  %s6 = scalar_select 0, %s5, %s3
  $region1: #{tpu_custom_call.1} parent=0
    #allocation2 [shape = 'u8[4096]{0}', space=vmem, size = 0x1000, scoped, tag = 'input window, operand 0, single buffered']
    #allocation3 [shape = 's32[1]{0}', space=sflag, size = 0x4, scoped, tag = 'scoped memory for tpu_custom_call.1']
    #allocation4 [shape = 's32[1]{0}', space=sflag, size = 0x4, scoped, tag = 'scoped memory for tpu_custom_call.1']
    #allocation5 [shape = 'u8[2048]{0}', space=vmem, size = 0x800, scoped, tag = 'input window, operand 1, single buffered']
    #allocation6 [shape = 's32[1]{0}', space=sflag, size = 0x4, scoped, tag = 'scoped memory for tpu_custom_call.1']
    #allocation7 [shape = 'u8[512]{0}', space=vmem, size = 0x400, scoped, tag = 'output window, operand 0, single buffered']
    %7 = vsyncpa [#allocation3], 0
    %8 = vsyncpa [#allocation6], 0
    %9 = vsyncpa [#allocation4], 0
    // Predicated region
    $region2: #{tpu_custom_call.1} parent=1 // pred_check
      _
    $region3: #{tpu_custom_call.1} parent=1 // pred_check_branch
      %11 = sbr.rel (0) target = $region5
    $region4: #{tpu_custom_call.1} parent=1 // pred_region
      %s13 = ssub.s32 128, 128
      %14 = vsyncadd [#allocation3], %s13
      %s16 = sshll.u32 [#allocation2], 4
      %s17 = int_to_ptr.vmem [resolvable:$true] %s16
      %19 = dma.hbm_to_vmem [thread:$0]  %s0, 128, %s17, [#allocation3]
    $region5: #{tpu_custom_call.1} parent=1 // pred_fallthru
      _
    // Predicated region
    $region6: #{tpu_custom_call.1} parent=1 // pred_check
      _
    $region7: #{tpu_custom_call.1} parent=1 // pred_check_branch
      %21 = sbr.rel (0) target = $region9
    $region8: #{tpu_custom_call.1} parent=1 // pred_region
      %s23 = ssub.s32 64, 64
      %24 = vsyncadd [#allocation6], %s23
      %s26 = sshll.u32 [#allocation5], 4
      %s27 = int_to_ptr.vmem [resolvable:$true] %s26
      %29 = dma.hbm_to_vmem [thread:$0]  %s1, 64, %s27, [#allocation6]
    $region9: #{tpu_custom_call.1} parent=1 // pred_fallthru
      _
    // Predicated region
    $region10: #{tpu_custom_call.1} parent=1 // pred_check
      _
    $region11: #{tpu_custom_call.1} parent=1 // pred_check_branch
      %31 = sbr.rel (0) target = $region13
    $region12: #{tpu_custom_call.1} parent=1 // pred_region
      %32 = dma.done [#allocation3], 128
    $region13: #{tpu_custom_call.1} parent=1 // pred_fallthru
      _
    // Predicated region
    $region14: #{tpu_custom_call.1} parent=1 // pred_check
      _
    $region15: #{tpu_custom_call.1} parent=1 // pred_check_branch
      %34 = sbr.rel (0) target = $region17
    $region16: #{tpu_custom_call.1} parent=1 // pred_region
      %35 = dma.done [#allocation6], 64
    $region17: #{tpu_custom_call.1} parent=1 // pred_fallthru
      _
    %v38 = vld [vmem:[#allocation5] sm:$0xf]
    %v39 = vld [vmem:[#allocation2] sm:$0xff]
    %vm40 = vcmask 261120
    %v42 = vsel %vm40, %v38, 0
    %v45 = vsel %vm40, %v39, 0
    %47 = vmatprep.subr.mxu0 0.0
    %48 = vmatpush1.xpose.msra.mxu0 %v45
    %49 = vmatprep.subr.mxu0 0.0
    %50 = vmatpush1.xpose.msra.mxu0 0.0
    %51 = vmatprep.subr.mxu0 0.0
    %52 = vmatpush1.xpose.msra.mxu0 0.0
    %53 = vmatprep.subr.mxu0 0.0
    %54 = vmatpush1.xpose.msra.mxu0 0.0
    %55 = vmatprep.subr.mxu0 0.0
    %56 = vmatpush1.xpose.msra.mxu0 0.0
    %57 = vmatprep.subr.mxu0 0.0
    %58 = vmatpush1.xpose.msra.mxu0 0.0
    %59 = vmatprep.subr.mxu0 0.0
    %60 = vmatpush1.xpose.msra.mxu0 0.0
    %61 = vmatprep.subr.mxu0 0.0
    %62 = vmatpush1.xpose.msra.mxu0 0.0
    %63 = vmatprep.subr.mxu0 0.0
    %64 = vmatpush1.xpose.msra.mxu0 0.0
    %65 = vmatprep.subr.mxu0 0.0
    %66 = vmatpush1.xpose.msra.mxu0 0.0
    %67 = vmatprep.subr.mxu0 0.0
    %68 = vmatpush1.xpose.msra.mxu0 0.0
    %69 = vmatprep.subr.mxu0 0.0
    %70 = vmatpush1.xpose.msra.mxu0 0.0
    %71 = vmatprep.subr.mxu0 0.0
    %72 = vmatpush1.xpose.msra.mxu0 0.0
    %73 = vmatprep.subr.mxu0 0.0
    %74 = vmatpush1.xpose.msra.mxu0 0.0
    %75 = vmatprep.subr.mxu0 0.0
    %76 = vmatpush1.xpose.msra.mxu0 0.0
    %77 = vmatprep.subr.mxu0 0.0
    %78 = vmatpush1.xpose.msra.mxu0 0.0
    %79 = vmatprep.subr.mxu0 0.0
    %80 = vmatpush1.xpose.msra.mxu0 0.0
    %81 = vmatprep.subr.mxu0 0.0
    %82 = vmatpush1.xpose.msra.mxu0 0.0
    %83 = vmatprep.subr.mxu0 0.0
    %84 = vmatpush1.xpose.msra.mxu0 0.0
    %85 = vmatprep.subr.mxu0 0.0
    %86 = vmatpush1.xpose.msra.mxu0 0.0
    %87 = vmatprep.subr.mxu0 0.0
    %88 = vmatpush1.xpose.msra.mxu0 0.0
    %89 = vmatprep.subr.mxu0 0.0
    %90 = vmatpush1.xpose.msra.mxu0 0.0
    %91 = vmatprep.subr.mxu0 0.0
    %92 = vmatpush1.xpose.msra.mxu0 0.0
    %93 = vmatprep.subr.mxu0 0.0
    %94 = vmatpush1.xpose.msra.mxu0 0.0
    %95 = vmatprep.subr.mxu0 0.0
    %96 = vmatpush1.xpose.msra.mxu0 0.0
    %97 = vmatprep.subr.mxu0 0.0
    %98 = vmatpush1.xpose.msra.mxu0 0.0
    %99 = vmatprep.subr.mxu0 0.0
    %100 = vmatpush1.xpose.msra.mxu0 0.0
    %101 = vmatprep.subr.mxu0 0.0
    %102 = vmatpush1.xpose.msra.mxu0 0.0
    %103 = vmatprep.subr.mxu0 0.0
    %104 = vmatpush1.xpose.msra.mxu0 0.0
    %105 = vmatprep.subr.mxu0 0.0
    %106 = vmatpush1.xpose.msra.mxu0 0.0
    %107 = vmatprep.subr.mxu0 0.0
    %108 = vmatpush1.xpose.msra.mxu0 0.0
    %109 = vmatprep.subr.mxu0 0.0
    %110 = vmatpush1.xpose.msra.mxu0 0.0
    %111 = vmatprep.mubr.f32.mxu0 0.0
    %112 = vmatmul.mubr.f32.gmra.mrb[0].mxu0 %v42
    %v113 = vpop.f32.mrb[0].mxu0
    %v114 = vadd.f32 0.0, %v113
    %v115 = vpop.f32.mrb[0].mxu0
    %116 = vdwg.mxu0
    %vm117 = vcmp.gt.f32.partialorder %v114, 0.0
    %vm118 = vmpackc.low %vm117, %vm117
    %vm119 = vmpackc.even %vm118, %vm118
    %v120 = vsel %vm119, 16843009, 0
    %vm121 = vcmask 57344
    %122 = vst.msk [vmem:[#allocation7] sm:$0x1] %vm121, %v120
    // Predicated region
    $region18: #{tpu_custom_call.1} parent=1 // pred_check
      _
    $region19: #{tpu_custom_call.1} parent=1 // pred_check_branch
      %124 = sbr.rel (0) target = $region21
    $region20: #{tpu_custom_call.1} parent=1 // pred_region
      %s126 = ssub.s32 16, 16
      %127 = vsyncadd [#allocation4], %s126
      %s129 = sshll.u32 [#allocation7], 4
      %s130 = int_to_ptr.vmem [resolvable:$true] %s129
      %132 = dma.vmem_to_hbm [thread:$0]  %s130, 16, %s2, [#allocation4]
    $region21: #{tpu_custom_call.1} parent=1 // pred_fallthru
      _
    // Predicated region
    $region22: #{tpu_custom_call.1} parent=1 // pred_check
      _
    $region23: #{tpu_custom_call.1} parent=1 // pred_check_branch
      %134 = sbr.rel (0) target = $region25
    $region24: #{tpu_custom_call.1} parent=1 // pred_region
      %135 = dma.done [#allocation4], 16
    $region25: #{tpu_custom_call.1} parent=1 // pred_fallthru
      _
    %136 = vsyncpa [#allocation3], 1
    %137 = vsyncpa [#allocation6], 1
    %138 = vsyncpa [#allocation4], 1

</llo_original>
